<compile_context>
chip_gen: v6e
topology: v6e:2x2x1
jax: 0.10.0
libtpu: 0.0.40
codegen_flags: <defaults>
</compile_context>

<pallas_src>
import functools

import jax
import jax.numpy as jnp
from jax.experimental import pallas as pl
from jax.experimental.pallas import tpu as pltpu


def _pick_tile(n, target):
    """Largest tile <= target (halving) that divides n; else the full n."""
    t = min(target, n)
    while t >= 8:
        if n % t == 0:
            return t
        t //= 2
    return n


def _vmem_limit_bytes():
    # ~75% of physical VMEM: ~96 MiB on v5e/v6e (128 MiB parts), ~48 MiB on
    # v7x (64 MiB part).  Fall back to 48 MiB if the query is unavailable.
    try:
        return int(pltpu.get_tpu_info().vmem_capacity_bytes) * 3 // 4
    except Exception:
        return 48 * 1024 * 1024


# --------------------------------------------------------------------------
# Kernel 1a: GroupNorm statistics.
# grid = (B, N//tn); the N-tile axis is a reduction accumulating per-channel
# sum / sum-of-squares in VMEM scratch.  Emits per-batch (1, C) scale/shift
# with gamma/beta folded:  xn = x * scale + shift.
# --------------------------------------------------------------------------
def _gn_stats_kernel(x_ref, acg_ref, agc_ref, gamma_ref, beta_ref,
                     scale_ref, shift_ref, s1_sc, s2_sc, *, eps, inv_count):
    t = pl.program_id(1)

    @pl.when(t == 0)
    def _():
        s1_sc[...] = jnp.zeros(s1_sc.shape, s1_sc.dtype)
        s2_sc[...] = jnp.zeros(s2_sc.shape, s2_sc.dtype)

    x = x_ref[...]                                          # (tn, C) f32
    s1_sc[...] += jnp.sum(x, axis=0, keepdims=True)         # (1, C)
    s2_sc[...] += jnp.sum(x * x, axis=0, keepdims=True)     # (1, C)

    @pl.when(t == pl.num_programs(1) - 1)
    def _():
        acg = acg_ref[...]                                  # (C, G) one-hot
        agc = agc_ref[...]                                  # (G, C) = acg.T
        gsum = jnp.dot(s1_sc[...], acg, preferred_element_type=jnp.float32)
        gsq = jnp.dot(s2_sc[...], acg, preferred_element_type=jnp.float32)
        gmean = gsum * inv_count                            # (1, G)
        # One-pass variance in f32; clamp guards tiny negative cancellation.
        gvar = jnp.maximum(gsq * inv_count - gmean * gmean, 0.0)
        grstd = jax.lax.rsqrt(gvar + eps)                   # (1, G)
        mean_c = jnp.dot(gmean, agc, preferred_element_type=jnp.float32)
        rstd_c = jnp.dot(grstd, agc, preferred_element_type=jnp.float32)
        scale = rstd_c * gamma_ref[...]                     # (1, C)
        scale_ref[...] = scale
        shift_ref[...] = beta_ref[...] - mean_c * scale


# --------------------------------------------------------------------------
# Kernel 1b: GroupNorm apply + q/k/v 1x1-conv projections (bf16 MXU matmuls).
# grid = (B, N//tn); weights are resident (constant block index).
# --------------------------------------------------------------------------
def _gn_apply_qkv_kernel(x_ref, scale_ref, shift_ref,
                         wq_ref, bq_ref, wk_ref, bk_ref, wv_ref, bv_ref,
                         xn_ref, q_ref, k_ref, v_ref):
    xn = x_ref[...] * scale_ref[...] + shift_ref[...]       # (tn, C) f32
    xn_ref[...] = xn.astype(xn_ref.dtype)                   # bf16 residual copy
    xb = xn.astype(jnp.bfloat16)
    q_ref[...] = (jnp.dot(xb, wq_ref[...], preferred_element_type=jnp.float32)
                  + bq_ref[...]).astype(q_ref.dtype)
    k_ref[...] = (jnp.dot(xb, wk_ref[...], preferred_element_type=jnp.float32)
                  + bk_ref[...]).astype(k_ref.dtype)
    v_ref[...] = (jnp.dot(xb, wv_ref[...], preferred_element_type=jnp.float32)
                  + bv_ref[...]).astype(v_ref.dtype)


# --------------------------------------------------------------------------
# Kernel 2: attention + output projection + residual.
# grid = (B, N//tq).  K/V are VMEM-resident full (N, C) bf16 blocks per batch
# (fetched once per batch element); the key reduction is an in-kernel pl.loop
# over pl.ds() chunks with a flash-style online softmax in VMEM scratch.
# --------------------------------------------------------------------------
def _attn_kernel(q_ref, k_ref, v_ref, xn_ref, wo_ref, bo_ref, out_ref,
                 m_sc, l_sc, acc_sc, *, tk):
    q = q_ref[...]                                          # (tq, C) bf16, pre-scaled
    num_kt = k_ref.shape[0] // tk                           # static

    m_sc[...] = jnp.full(m_sc.shape, -jnp.inf, dtype=m_sc.dtype)
    l_sc[...] = jnp.zeros(l_sc.shape, l_sc.dtype)
    acc_sc[...] = jnp.zeros(acc_sc.shape, acc_sc.dtype)

    @pl.loop(0, num_kt)
    def _(i):
        off = pl.multiple_of(i * tk, tk)
        k = k_ref[pl.ds(off, tk), :]                        # (tk, C) bf16
        v = v_ref[pl.ds(off, tk), :]                        # (tk, C) bf16
        # scores[i, j] = sum_c q[i, c] * k[j, c]  (no transpose materialized)
        s = jax.lax.dot_general(q, k, (((1,), (1,)), ((), ())),
                                preferred_element_type=jnp.float32)  # (tq, tk)
        m_prev = m_sc[...]
        m_new = jnp.maximum(m_prev, jnp.max(s, axis=-1, keepdims=True))
        alpha = jnp.exp(m_prev - m_new)
        # TODO-less note: on v6e/v7x exp((s - m_new).astype(bf16)) roughly
        # doubles EUP throughput; kept in f32 for v5e portability / accuracy.
        p = jnp.exp(s - m_new)
        l_sc[...] = alpha * l_sc[...] + jnp.sum(p, axis=-1, keepdims=True)
        acc_sc[...] = alpha * acc_sc[...] + jnp.dot(
            p.astype(v.dtype), v, preferred_element_type=jnp.float32)
        m_sc[...] = m_new

    # Exact reciprocal: runs once per (b, query tile), essentially free.
    att = (acc_sc[...] * (1.0 / l_sc[...])).astype(jnp.bfloat16)       # (tq, C)
    proj = jnp.dot(att, wo_ref[...],
                   preferred_element_type=jnp.float32) + bo_ref[...]
    # Residual on the *normalized* input (PyTorch forward rebinds x = norm(x)).
    out_ref[...] = (xn_ref[...].astype(jnp.float32) + proj).astype(out_ref.dtype)


# --------------------------------------------------------------------------
# Wrapper
# --------------------------------------------------------------------------
def nonlocal_block(x_nchw, params, *, num_groups=32, eps=1e-5,
                   block_q=256, block_k=256, block_n=512):
    B, C, H, W = x_nchw.shape
    assert C % num_groups == 0, "GroupNorm requires C % num_groups == 0"
    N = H * W
    G = num_groups
    cs = C // G

    # Channel-last layout so C sits on lanes (wrapper-side plumbing only).
    x_nc = jnp.transpose(x_nchw.reshape(B, C, N), (0, 2, 1)).astype(jnp.float32)

    # Tiny one-hot group-membership matrices for group reduce/broadcast.
    gid = jnp.arange(C) // cs
    a_cg = (gid[:, None] == jnp.arange(G)[None, :]).astype(jnp.float32)  # (C, G)
    a_gc = a_cg.T                                                         # (G, C)

    gamma = params["gamma"].reshape(1, C).astype(jnp.float32)
    beta = params["beta"].reshape(1, C).astype(jnp.float32)

    attn_scale = float(C) ** (-0.5)
    # 1x1 convs become (tn, C) @ (C, C): pass transposed weights in bf16; fold
    # the attention scale into the q projection so no N^2 multiply is needed.
    wqT = (params["wq"].T * attn_scale).astype(jnp.bfloat16)
    bq = (params["bq"] * attn_scale).reshape(1, C).astype(jnp.float32)
    wkT = params["wk"].T.astype(jnp.bfloat16)
    bk = params["bk"].reshape(1, C).astype(jnp.float32)
    wvT = params["wv"].T.astype(jnp.bfloat16)
    bv = params["bv"].reshape(1, C).astype(jnp.float32)
    woT = params["wo"].T.astype(jnp.bfloat16)
    bo = params["bo"].reshape(1, C).astype(jnp.float32)

    vmem_limit = _vmem_limit_bytes()
    tn = _pick_tile(N, block_n)
    tq = _pick_tile(N, block_q)
    tk = _pick_tile(N, block_k)

    cc_spec = pl.BlockSpec((C, C), lambda b, t: (0, 0))
    row_spec = pl.BlockSpec((1, C), lambda b, t: (0, 0))
    xtile_spec = pl.BlockSpec((None, tn, C), lambda b, t: (b, t, 0))
    bcast_spec = pl.BlockSpec((None, 1, C), lambda b, t: (b, 0, 0))

    # ---------------- kernel 1a: GroupNorm statistics ----------------
    stats_kernel = functools.partial(_gn_stats_kernel, eps=float(eps),
                                     inv_count=1.0 / float(cs * N))
    gn_scale, gn_shift = pl.pallas_call(
        stats_kernel,
        out_shape=(jax.ShapeDtypeStruct((B, 1, C), jnp.float32),
                   jax.ShapeDtypeStruct((B, 1, C), jnp.float32)),
        grid=(B, N // tn),
        in_specs=[xtile_spec,
                  pl.BlockSpec((C, G), lambda b, t: (0, 0)),
                  pl.BlockSpec((G, C), lambda b, t: (0, 0)),
                  row_spec, row_spec],
        out_specs=[bcast_spec, bcast_spec],
        scratch_shapes=[pltpu.VMEM((1, C), jnp.float32),
                        pltpu.VMEM((1, C), jnp.float32)],
        compiler_params=pltpu.CompilerParams(
            dimension_semantics=("parallel", "arbitrary"),
            vmem_limit_bytes=vmem_limit),
    )(x_nc, a_cg, a_gc, gamma, beta)

    # ---------------- kernel 1b: apply + QKV projections ----------------
    xn, q, k, v = pl.pallas_call(
        _gn_apply_qkv_kernel,
        out_shape=(jax.ShapeDtypeStruct((B, N, C), jnp.bfloat16),
                   jax.ShapeDtypeStruct((B, N, C), jnp.bfloat16),
                   jax.ShapeDtypeStruct((B, N, C), jnp.bfloat16),
                   jax.ShapeDtypeStruct((B, N, C), jnp.bfloat16)),
        grid=(B, N // tn),
        in_specs=[xtile_spec, bcast_spec, bcast_spec,
                  cc_spec, row_spec, cc_spec, row_spec, cc_spec, row_spec],
        out_specs=[xtile_spec, xtile_spec, xtile_spec, xtile_spec],
        compiler_params=pltpu.CompilerParams(
            dimension_semantics=("parallel", "parallel"),
            vmem_limit_bytes=vmem_limit),
    )(x_nc, gn_scale, gn_shift, wqT, bq, wkT, bk, wvT, bv)

    # ---------------- kernel 2: attention + projection + residual ----------
    attn_kernel = functools.partial(_attn_kernel, tk=tk)
    q_spec = pl.BlockSpec((None, tq, C), lambda b, qi: (b, qi, 0))
    kv_spec = pl.BlockSpec((None, N, C), lambda b, qi: (b, 0, 0))  # resident/batch

    out_nc = pl.pallas_call(
        attn_kernel,
        out_shape=jax.ShapeDtypeStruct((B, N, C), jnp.float32),
        grid=(B, N // tq),
        in_specs=[q_spec, kv_spec, kv_spec, q_spec,
                  pl.BlockSpec((C, C), lambda b, qi: (0, 0)),
                  pl.BlockSpec((1, C), lambda b, qi: (0, 0))],
        out_specs=pl.BlockSpec((None, tq, C), lambda b, qi: (b, qi, 0)),
        scratch_shapes=[pltpu.VMEM((tq, 1), jnp.float32),
                        pltpu.VMEM((tq, 1), jnp.float32),
                        pltpu.VMEM((tq, C), jnp.float32)],
        compiler_params=pltpu.CompilerParams(
            dimension_semantics=("parallel", "parallel"),
            vmem_limit_bytes=vmem_limit),
    )(q, k, v, xn, woT, bo)

    return jnp.transpose(out_nc, (0, 2, 1)).reshape(B, C, H, W)


# --------------------------------------------------------------------------
# Pure-JAX reference mirroring the PyTorch forward (f32 throughout)
# --------------------------------------------------------------------------
def nonlocal_block_ref(x, params, *, num_groups=32, eps=1e-5):
    B, C, H, W = x.shape
    xg = x.reshape(B, num_groups, C // num_groups, H, W)
    mean = xg.mean(axis=(2, 3, 4), keepdims=True)
    var = xg.var(axis=(2, 3, 4), keepdims=True)
    xn = ((xg - mean) / jnp.sqrt(var + eps)).reshape(B, C, H, W)
    xn = xn * params["gamma"][None, :, None, None] \
        + params["beta"][None, :, None, None]

    def conv1x1(w, b, t):
        return jnp.einsum("oc,bchw->bohw", w, t) + b[None, :, None, None]

    q = conv1x1(params["wq"], params["bq"], xn).reshape(B, C, H * W)
    k = conv1x1(params["wk"], params["bk"], xn).reshape(B, C, H * W)
    v = conv1x1(params["wv"], params["bv"], xn).reshape(B, C, H * W)
    scores = jnp.einsum("bci,bcj->bij", q, k) * float(C) ** (-0.5)
    w = jax.nn.softmax(scores, axis=2)
    att = jnp.einsum("bcj,bij->bci", v, w).reshape(B, C, H, W)
    proj = conv1x1(params["wo"], params["bo"], att)
    # PyTorch forward rebinds x = norm(x), so the residual uses normalized x.
    return xn + proj


if __name__ == "__main__":
    # GroupNorm(32, C) requires C % 32 == 0; N = H*W = 256 exercises the
    # resident-K/V path with a single 256-wide score tile per query tile.
    B, C, H, W = 2, 64, 16, 16

    key = jax.random.PRNGKey(0)
    keys = jax.random.split(key, 11)
    x = jax.random.normal(keys[0], (B, C, H, W), jnp.float32)

    params = {
        "gamma": 1.0 + 0.1 * jax.random.normal(keys[1], (C,), jnp.float32),
        "beta": 0.1 * jax.random.normal(keys[2], (C,), jnp.float32),
        "wq": 0.1 * jax.random.normal(keys[3], (C, C), jnp.float32),
        "bq": 0.01 * jax.random.normal(keys[4], (C,), jnp.float32),
        "wk": 0.1 * jax.random.normal(keys[5], (C, C), jnp.float32),
        "bk": 0.01 * jax.random.normal(keys[6], (C,), jnp.float32),
        "wv": 0.1 * jax.random.normal(keys[7], (C, C), jnp.float32),
        "bv": 0.01 * jax.random.normal(keys[8], (C,), jnp.float32),
        "wo": 0.1 * jax.random.normal(keys[9], (C, C), jnp.float32),
        "bo": 0.01 * jax.random.normal(keys[10], (C,), jnp.float32),
    }

    out = jax.block_until_ready(nonlocal_block(x, params))
    ref = nonlocal_block_ref(x, params)

    assert out.shape == (B, C, H, W)
    err = float(jnp.max(jnp.abs(out - ref)))
    # Tolerance accounts for bf16 weights, bf16 q/k/v/xn intermediates and
    # bf16 softmax probabilities (all MXU-native), against the f32 reference.
    assert err < 4e-2, f"max abs err = {err}"
    print("KERNEL_OK")
</pallas_src>

<mosaic_0001>
module attributes {stable_mosaic.version = 11 : i64} {
  func.func @_gn_stats_kernel(%arg0: i32, %arg1: i32, %arg2: memref<1x256x64xf32, #tpu.memory_space<vmem>>, %arg3: memref<64x32xf32, #tpu.memory_space<vmem>>, %arg4: memref<32x64xf32, #tpu.memory_space<vmem>>, %arg5: memref<1x64xf32, #tpu.memory_space<vmem>>, %arg6: memref<1x64xf32, #tpu.memory_space<vmem>>, %arg7: memref<1x1x64xf32, #tpu.memory_space<vmem>>, %arg8: memref<1x1x64xf32, #tpu.memory_space<vmem>>, %arg9: memref<1x64xf32, #tpu.memory_space<vmem>>, %arg10: memref<1x64xf32, #tpu.memory_space<vmem>>) attributes {dimension_semantics = [#tpu.dimension_semantics<parallel>, #tpu.dimension_semantics<arbitrary>], iteration_bounds = array<i64: 2, 1>, scalar_prefetch = 0 : i64, scratch_operands = 2 : i64, tpu.core_type = #tpu.core_type<tc>, window_params = [{transform_indices = @transform_0, window_bounds = array<i64: 1, 256, 64>}, {pipeline_mode = #tpu.pipeline_mode<synchronous>, transform_indices = @transform_1, window_bounds = array<i64: 64, 32>}, {pipeline_mode = #tpu.pipeline_mode<synchronous>, transform_indices = @transform_2, window_bounds = array<i64: 32, 64>}, {pipeline_mode = #tpu.pipeline_mode<synchronous>, transform_indices = @transform_3, window_bounds = array<i64: 1, 64>}, {pipeline_mode = #tpu.pipeline_mode<synchronous>, transform_indices = @transform_4, window_bounds = array<i64: 1, 64>}, {transform_indices = @transform_5, window_bounds = array<i64: 1, 1, 64>}, {transform_indices = @transform_6, window_bounds = array<i64: 1, 1, 64>}]} {
    %c0_i32 = arith.constant 0 : i32
    %0 = arith.cmpi eq, %arg1, %c0_i32 : i32
    %1 = arith.extui %0 : i1 to i32
    %c0_i32_0 = arith.constant 0 : i32
    %2 = arith.cmpi ne, %1, %c0_i32_0 : i32
    scf.if %2 {
      %cst_14 = arith.constant 0.000000e+00 : f32
      %19 = vector.broadcast %cst_14 : f32 to vector<1x64xf32>
      %c0_15 = arith.constant 0 : index
      %c0_16 = arith.constant 0 : index
      %20 = vector.load %arg9[%c0_15, %c0_16] : memref<1x64xf32, #tpu.memory_space<vmem>>, vector<1x64xf32>
      tpu.vector_store %arg9[%c0_15, %c0_16], %19 {strides = array<i32>} : memref<1x64xf32, #tpu.memory_space<vmem>>, vector<1x64xf32>,
      %cst_17 = arith.constant 0.000000e+00 : f32
      %21 = vector.broadcast %cst_17 : f32 to vector<1x64xf32>
      %c0_18 = arith.constant 0 : index
      %c0_19 = arith.constant 0 : index
      %22 = vector.load %arg10[%c0_18, %c0_19] : memref<1x64xf32, #tpu.memory_space<vmem>>, vector<1x64xf32>
      tpu.vector_store %arg10[%c0_18, %c0_19], %21 {strides = array<i32>} : memref<1x64xf32, #tpu.memory_space<vmem>>, vector<1x64xf32>,
    } else {
    }
    %c0 = arith.constant 0 : index
    %c0_1 = arith.constant 0 : index
    %c0_2 = arith.constant 0 : index
    %3 = vector.load %arg2[%c0, %c0_1, %c0_2] : memref<1x256x64xf32, #tpu.memory_space<vmem>>, vector<1x256x64xf32>
    %4 = vector.shape_cast %3 : vector<1x256x64xf32> to vector<256x64xf32>
    %c0_3 = arith.constant 0 : index
    %c0_4 = arith.constant 0 : index
    %5 = vector.load %arg9[%c0_3, %c0_4] : memref<1x64xf32, #tpu.memory_space<vmem>>, vector<1x64xf32>
    %cst = arith.constant dense<0.000000e+00> : vector<64xf32>
    %6 = vector.multi_reduction <add>, %4, %cst [0] : vector<256x64xf32> to vector<64xf32>
    %7 = vector.shape_cast %6 : vector<64xf32> to vector<1x64xf32>
    %8 = arith.addf %5, %7 : vector<1x64xf32>
    %c0_5 = arith.constant 0 : index
    %c0_6 = arith.constant 0 : index
    %9 = vector.load %arg9[%c0_5, %c0_6] : memref<1x64xf32, #tpu.memory_space<vmem>>, vector<1x64xf32>
    tpu.vector_store %arg9[%c0_5, %c0_6], %8 {strides = array<i32>} : memref<1x64xf32, #tpu.memory_space<vmem>>, vector<1x64xf32>,
    %c0_7 = arith.constant 0 : index
    %c0_8 = arith.constant 0 : index
    %10 = vector.load %arg10[%c0_7, %c0_8] : memref<1x64xf32, #tpu.memory_space<vmem>>, vector<1x64xf32>
    %11 = arith.mulf %4, %4 : vector<256x64xf32>
    %cst_9 = arith.constant dense<0.000000e+00> : vector<64xf32>
    %12 = vector.multi_reduction <add>, %11, %cst_9 [0] : vector<256x64xf32> to vector<64xf32>
    %13 = vector.shape_cast %12 : vector<64xf32> to vector<1x64xf32>
    %14 = arith.addf %10, %13 : vector<1x64xf32>
    %c0_10 = arith.constant 0 : index
    %c0_11 = arith.constant 0 : index
    %15 = vector.load %arg10[%c0_10, %c0_11] : memref<1x64xf32, #tpu.memory_space<vmem>>, vector<1x64xf32>
    tpu.vector_store %arg10[%c0_10, %c0_11], %14 {strides = array<i32>} : memref<1x64xf32, #tpu.memory_space<vmem>>, vector<1x64xf32>,
    %c0_i32_12 = arith.constant 0 : i32
    %16 = arith.cmpi eq, %arg1, %c0_i32_12 : i32
    %17 = arith.extui %16 : i1 to i32
    %c0_i32_13 = arith.constant 0 : i32
    %18 = arith.cmpi ne, %17, %c0_i32_13 : i32
    scf.if %18 {
      %c0_14 = arith.constant 0 : index
      %c0_15 = arith.constant 0 : index
      %19 = vector.load %arg3[%c0_14, %c0_15] : memref<64x32xf32, #tpu.memory_space<vmem>>, vector<64x32xf32>
      %c0_16 = arith.constant 0 : index
      %c0_17 = arith.constant 0 : index
      %20 = vector.load %arg4[%c0_16, %c0_17] : memref<32x64xf32, #tpu.memory_space<vmem>>, vector<32x64xf32>
      %c0_18 = arith.constant 0 : index
      %c0_19 = arith.constant 0 : index
      %21 = vector.load %arg9[%c0_18, %c0_19] : memref<1x64xf32, #tpu.memory_space<vmem>>, vector<1x64xf32>
      %cst_20 = arith.constant dense<0.000000e+00> : vector<1x32xf32>
      %22 = tpu.matmul %21, %19, %cst_20 {dimension_numbers = #tpu.dot_dimension_numbers<[1], [0], [0], [1], [0, 0, 1, 1], [], []>} : vector<1x64xf32>, vector<64x32xf32>, vector<1x32xf32> -> vector<1x32xf32>
      %c0_21 = arith.constant 0 : index
      %c0_22 = arith.constant 0 : index
      %23 = vector.load %arg10[%c0_21, %c0_22] : memref<1x64xf32, #tpu.memory_space<vmem>>, vector<1x64xf32>
      %cst_23 = arith.constant dense<0.000000e+00> : vector<1x32xf32>
      %24 = tpu.matmul %23, %19, %cst_23 {dimension_numbers = #tpu.dot_dimension_numbers<[1], [0], [0], [1], [0, 0, 1, 1], [], []>} : vector<1x64xf32>, vector<64x32xf32>, vector<1x32xf32> -> vector<1x32xf32>
      %cst_24 = arith.constant 0.001953125 : f32
      %25 = vector.broadcast %cst_24 : f32 to vector<1x32xf32>
      %26 = arith.mulf %22, %25 : vector<1x32xf32>
      %cst_25 = arith.constant 0.001953125 : f32
      %27 = vector.broadcast %cst_25 : f32 to vector<1x32xf32>
      %28 = arith.mulf %24, %27 : vector<1x32xf32>
      %29 = arith.mulf %26, %26 : vector<1x32xf32>
      %30 = arith.subf %28, %29 : vector<1x32xf32>
      %cst_26 = arith.constant 0.000000e+00 : f32
      %31 = vector.broadcast %cst_26 : f32 to vector<1x32xf32>
      %32 = arith.maximumf %30, %31 : vector<1x32xf32>
      %cst_27 = arith.constant 9.99999974E-6 : f32
      %33 = vector.broadcast %cst_27 : f32 to vector<1x32xf32>
      %34 = arith.addf %32, %33 : vector<1x32xf32>
      %35 = math.rsqrt %34 : vector<1x32xf32>
      %cst_28 = arith.constant dense<0.000000e+00> : vector<1x64xf32>
      %36 = tpu.matmul %26, %20, %cst_28 {dimension_numbers = #tpu.dot_dimension_numbers<[1], [0], [0], [1], [0, 0, 1, 1], [], []>} : vector<1x32xf32>, vector<32x64xf32>, vector<1x64xf32> -> vector<1x64xf32>
      %cst_29 = arith.constant dense<0.000000e+00> : vector<1x64xf32>
      %37 = tpu.matmul %35, %20, %cst_29 {dimension_numbers = #tpu.dot_dimension_numbers<[1], [0], [0], [1], [0, 0, 1, 1], [], []>} : vector<1x32xf32>, vector<32x64xf32>, vector<1x64xf32> -> vector<1x64xf32>
      %c0_30 = arith.constant 0 : index
      %c0_31 = arith.constant 0 : index
      %38 = vector.load %arg5[%c0_30, %c0_31] : memref<1x64xf32, #tpu.memory_space<vmem>>, vector<1x64xf32>
      %39 = arith.mulf %37, %38 : vector<1x64xf32>
      %c0_32 = arith.constant 0 : index
      %c0_33 = arith.constant 0 : index
      %c0_34 = arith.constant 0 : index
      %40 = vector.load %arg7[%c0_32, %c0_33, %c0_34] : memref<1x1x64xf32, #tpu.memory_space<vmem>>, vector<1x1x64xf32>
      %41 = vector.shape_cast %40 : vector<1x1x64xf32> to vector<1x64xf32>
      %42 = vector.shape_cast %39 : vector<1x64xf32> to vector<1x1x64xf32>
      tpu.vector_store %arg7[%c0_32, %c0_33, %c0_34], %42 {strides = array<i32>} : memref<1x1x64xf32, #tpu.memory_space<vmem>>, vector<1x1x64xf32>,
      %c0_35 = arith.constant 0 : index
      %c0_36 = arith.constant 0 : index
      %43 = vector.load %arg6[%c0_35, %c0_36] : memref<1x64xf32, #tpu.memory_space<vmem>>, vector<1x64xf32>
      %44 = arith.mulf %36, %39 : vector<1x64xf32>
      %45 = arith.subf %43, %44 : vector<1x64xf32>
      %c0_37 = arith.constant 0 : index
      %c0_38 = arith.constant 0 : index
      %c0_39 = arith.constant 0 : index
      %46 = vector.load %arg8[%c0_37, %c0_38, %c0_39] : memref<1x1x64xf32, #tpu.memory_space<vmem>>, vector<1x1x64xf32>
      %47 = vector.shape_cast %46 : vector<1x1x64xf32> to vector<1x64xf32>
      %48 = vector.shape_cast %45 : vector<1x64xf32> to vector<1x1x64xf32>
      tpu.vector_store %arg8[%c0_37, %c0_38, %c0_39], %48 {strides = array<i32>} : memref<1x1x64xf32, #tpu.memory_space<vmem>>, vector<1x1x64xf32>,
    } else {
    }
    return
  }
  func.func @transform_0(%arg0: i32, %arg1: i32) -> (i32, i32, i32) {
    %c0_i32 = arith.constant 0 : i32
    %c0_i32_0 = arith.constant 0 : i32
    return %arg0, %arg1, %c0_i32 : i32, i32, i32
  }
  func.func @transform_1(%arg0: i32, %arg1: i32) -> (i32, i32) {
    %c0_i32 = arith.constant 0 : i32
    %c0_i32_0 = arith.constant 0 : i32
    %c0_i32_1 = arith.constant 0 : i32
    return %c0_i32, %c0_i32_0 : i32, i32
  }
  func.func @transform_2(%arg0: i32, %arg1: i32) -> (i32, i32) {
    %c0_i32 = arith.constant 0 : i32
    %c0_i32_0 = arith.constant 0 : i32
    %c0_i32_1 = arith.constant 0 : i32
    return %c0_i32, %c0_i32_0 : i32, i32
  }
  func.func @transform_3(%arg0: i32, %arg1: i32) -> (i32, i32) {
    %c0_i32 = arith.constant 0 : i32
    %c0_i32_0 = arith.constant 0 : i32
    %c0_i32_1 = arith.constant 0 : i32
    return %c0_i32, %c0_i32_0 : i32, i32
  }
  func.func @transform_4(%arg0: i32, %arg1: i32) -> (i32, i32) {
    %c0_i32 = arith.constant 0 : i32
    %c0_i32_0 = arith.constant 0 : i32
    %c0_i32_1 = arith.constant 0 : i32
    return %c0_i32, %c0_i32_0 : i32, i32
  }
  func.func @transform_5(%arg0: i32, %arg1: i32) -> (i32, i32, i32) {
    %c0_i32 = arith.constant 0 : i32
    %c0_i32_0 = arith.constant 0 : i32
    %c0_i32_1 = arith.constant 0 : i32
    return %arg0, %c0_i32, %c0_i32_0 : i32, i32, i32
  }
  func.func @transform_6(%arg0: i32, %arg1: i32) -> (i32, i32, i32) {
    %c0_i32 = arith.constant 0 : i32
    %c0_i32_0 = arith.constant 0 : i32
    %c0_i32_1 = arith.constant 0 : i32
    return %arg0, %c0_i32, %c0_i32_0 : i32, i32, i32
  }
}

</mosaic_0001>

<llo_original>
// kernel: tpu_custom_call.1
$region0: #{tpu_custom_call.1}
  #allocation0 [shape = 'u32[]', space=smem, size = 0x4, offset = 0x4, fixed_abs, tag = 'smem constant byte address 0x4 - core index']
  #allocation1 [shape = 'u32[144,128]{1,0:T(1,128)}', space=vmem, size = 0x12000, scoped, tag = 'internal scratch']
  #allocation2 [shape = 'f32[1,64]{1,0:T(1,128)}', space=vmem, size = 0x200, scoped, tag = 'scratch operand']
  #allocation3 [shape = 'f32[1,64]{1,0:T(1,128)}', space=vmem, size = 0x200, scoped, tag = 'scratch operand']
  %s0 = inlined_call_operand.vmem [shape: f32[2,256,64], index: 0, kind: input, shape index: {}]
  %s1 = inlined_call_operand.vmem [shape: f32[64,32], index: 1, kind: input, shape index: {}]
  %s2 = inlined_call_operand.vmem [shape: f32[32,64], index: 2, kind: input, shape index: {}]
  %s3 = inlined_call_operand.vmem [shape: f32[1,64], index: 3, kind: input, shape index: {}]
  %s4 = inlined_call_operand.vmem [shape: f32[1,64], index: 4, kind: input, shape index: {}]
  %s5 = inlined_call_operand.hbm [shape: f32[2,1,64], index: 5, kind: output, shape index: {0}]
  %s6 = inlined_call_operand.hbm [shape: f32[2,1,64], index: 6, kind: output, shape index: {1}]
  %7 = xla_tuple %s5, %s6
  %s8 = sld [smem:[#allocation0]]
  $region69: #{tpu_custom_call.1} parent=0
    _
  %s10 = ssub.s32 1, %s8
  %s11 = scalar_select 0, %s10, %s8
  $region1: #{tpu_custom_call.1} parent=0
    #allocation4 [shape = 'u8[1024]{0}', space=vmem, size = 0x400, scoped, tag = 'output window, operand 0']
    #allocation5 [shape = 's32[2]{0}', space=sflag, size = 0x8, scoped, tag = 'scoped memory for tpu_custom_call.1']
    #allocation6 [shape = 'u8[1024]{0}', space=vmem, size = 0x400, scoped, tag = 'output window, operand 1']
    #allocation7 [shape = 's32[2]{0}', space=sflag, size = 0x8, scoped, tag = 'scoped memory for tpu_custom_call.1']
    %12 = vsyncpa [#allocation5], 0
    %s13 = scalar_lea.sflag [#allocation5], 1
    %14 = vsyncpa %s13, 0
    %15 = vsyncpa [#allocation7], 0
    %s16 = scalar_lea.sflag [#allocation7], 1
    %17 = vsyncpa %s16, 0
    loop: start=0, step=1, limit=4
    $region2: #{tpu_custom_call.1} parent=1 // loop_pre_header
      _
    $region3: #{tpu_custom_call.1} parent=1 // loop_header
      %s19 = sphi 0, %s23
      %p20 = scmp.ge.s32.totalorder %s19, 4
      %s26 = sphi 0, %s38
      %s27 = sphi 0, %s34
      %s28 = sphi 0, %s26
      %s29 = sphi 0, %s27
      %s30 = sphi 0, %s28
      %s31 = sphi 0, %s29
      %s43 = sphi 0, %s45
      %s46 = sphi 0, %s43
      %s47 = sphi 0, %s46
      %s63 = sphi 0, %s47
      %s67 = sphi 0, %s67
      %s69 = sphi 0, %s67
      %s70 = sphi 0, %s69
      %s84 = sphi 0, %s70
      %s88 = sphi 0, %s88
      %s90 = sphi 0, %s88
      %s91 = sphi 0, %s90
      %s105 = sphi 0, %s91
      %s109 = sphi 0, %s109
      %s111 = sphi 0, %s109
      %s112 = sphi 0, %s111
      %s126 = sphi 0, %s112
      %s130 = sphi 0, %s130
      %s132 = sphi 0, %s130
      %s133 = sphi 0, %s132
      %s147 = sphi 0, %s133
      %s153 = sphi 0, %s155
      %s156 = sphi 0, %s153
      %s157 = sphi 0, %s156
      %s173 = sphi 0, %s157
      %s179 = sphi 0, %s181
      %s182 = sphi 0, %s179
      %s183 = sphi 0, %s182
      %s199 = sphi 0, %s183
    $region4: #{tpu_custom_call.1} parent=1 // loop_header_branch
      %22 = sbr.rel (%p20) target = $region8
    $region5: #{tpu_custom_call.1} parent=1 // loop_body
      %s24 = ssub.s32 %s19, 1
      %s25 = ssub.s32 %s19, 2
      %s32 = sadd.s32 1, %s27
      %p33 = scmp.ge.s32.totalorder %s32, 1
      %s34 = scalar_select %p33, 0, %s32
      %s35 = sadd.s32 1, %s26
      %s36 = scalar_select %p33, %s35, %s26
      %p37 = scmp.ge.s32.totalorder %s36, 2
      %s38 = scalar_select %p37, 0, %s36
      %s39 = ssub.s32 %s26, %s38
      %s40 = ssub.s32 %s27, %s34
      %s41 = sor.u32 %s39, %s40
      %p42 = scmp.eq.s32.totalorder %s41, 0
      %s44 = sadd.s32 %s43, 1
      %s45 = scalar_select %p42, %s43, %s44
      %p48 = pneg %p42
      %p49 = scmp.eq.s32.totalorder %s19, 1
      %p50 = por %p48, %p49
      %p51 = scmp.ne.s32.totalorder %s43, %s46
      %p52 = scmp.eq.s32.totalorder %s19, 0
      %p53 = por %p51, %p52
      %p54 = scmp.ne.s32.totalorder %s43, %s46
      %p55 = scmp.eq.s32.totalorder %s24, 1
      %p56 = por %p54, %p55
      %p57 = scmp.ne.s32.totalorder %s46, %s47
      %p58 = scmp.eq.s32.totalorder %s24, 0
      %p59 = por %p57, %p58
      %p60 = scmp.ne.s32.totalorder %s46, %s47
      %p61 = scmp.eq.s32.totalorder %s25, 1
      %p62 = por %p60, %p61
      %p64 = scmp.ne.s32.totalorder %s47, %s63
      %p65 = scmp.eq.s32.totalorder %s25, 0
      %p66 = por %p64, %p65
      %s68 = sadd.s32 %s67, 1
      %p71 = scmp.eq.s32.totalorder %s19, 1
      %p72 = scmp.ne.s32.totalorder %s67, %s69
      %p73 = scmp.eq.s32.totalorder %s19, 0
      %p74 = por %p72, %p73
      %p75 = scmp.ne.s32.totalorder %s67, %s69
      %p76 = scmp.eq.s32.totalorder %s24, 1
      %p77 = por %p75, %p76
      %p78 = scmp.ne.s32.totalorder %s69, %s70
      %p79 = scmp.eq.s32.totalorder %s24, 0
      %p80 = por %p78, %p79
      %p81 = scmp.ne.s32.totalorder %s69, %s70
      %p82 = scmp.eq.s32.totalorder %s25, 1
      %p83 = por %p81, %p82
      %p85 = scmp.ne.s32.totalorder %s70, %s84
      %p86 = scmp.eq.s32.totalorder %s25, 0
      %p87 = por %p85, %p86
      %s89 = sadd.s32 %s88, 1
      %p92 = scmp.eq.s32.totalorder %s19, 1
      %p93 = scmp.ne.s32.totalorder %s88, %s90
      %p94 = scmp.eq.s32.totalorder %s19, 0
      %p95 = por %p93, %p94
      %p96 = scmp.ne.s32.totalorder %s88, %s90
      %p97 = scmp.eq.s32.totalorder %s24, 1
      %p98 = por %p96, %p97
      %p99 = scmp.ne.s32.totalorder %s90, %s91
      %p100 = scmp.eq.s32.totalorder %s24, 0
      %p101 = por %p99, %p100
      %p102 = scmp.ne.s32.totalorder %s90, %s91
      %p103 = scmp.eq.s32.totalorder %s25, 1
      %p104 = por %p102, %p103
      %p106 = scmp.ne.s32.totalorder %s91, %s105
      %p107 = scmp.eq.s32.totalorder %s25, 0
      %p108 = por %p106, %p107
      %s110 = sadd.s32 %s109, 1
      %p113 = scmp.eq.s32.totalorder %s19, 1
      %p114 = scmp.ne.s32.totalorder %s109, %s111
      %p115 = scmp.eq.s32.totalorder %s19, 0
      %p116 = por %p114, %p115
      %p117 = scmp.ne.s32.totalorder %s109, %s111
      %p118 = scmp.eq.s32.totalorder %s24, 1
      %p119 = por %p117, %p118
      %p120 = scmp.ne.s32.totalorder %s111, %s112
      %p121 = scmp.eq.s32.totalorder %s24, 0
      %p122 = por %p120, %p121
      %p123 = scmp.ne.s32.totalorder %s111, %s112
      %p124 = scmp.eq.s32.totalorder %s25, 1
      %p125 = por %p123, %p124
      %p127 = scmp.ne.s32.totalorder %s112, %s126
      %p128 = scmp.eq.s32.totalorder %s25, 0
      %p129 = por %p127, %p128
      %s131 = sadd.s32 %s130, 1
      %p134 = scmp.eq.s32.totalorder %s19, 1
      %p135 = scmp.ne.s32.totalorder %s130, %s132
      %p136 = scmp.eq.s32.totalorder %s19, 0
      %p137 = por %p135, %p136
      %p138 = scmp.ne.s32.totalorder %s130, %s132
      %p139 = scmp.eq.s32.totalorder %s24, 1
      %p140 = por %p138, %p139
      %p141 = scmp.ne.s32.totalorder %s132, %s133
      %p142 = scmp.eq.s32.totalorder %s24, 0
      %p143 = por %p141, %p142
      %p144 = scmp.ne.s32.totalorder %s132, %s133
      %p145 = scmp.eq.s32.totalorder %s25, 1
      %p146 = por %p144, %p145
      %p148 = scmp.ne.s32.totalorder %s133, %s147
      %p149 = scmp.eq.s32.totalorder %s25, 0
      %p150 = por %p148, %p149
      %s151 = ssub.s32 %s26, %s38
      %p152 = scmp.eq.s32.totalorder %s151, 0
      %s154 = sadd.s32 %s153, 1
      %s155 = scalar_select %p152, %s153, %s154
      %p158 = pneg %p152
      %p159 = scmp.eq.s32.totalorder %s19, 1
      %p160 = por %p158, %p159
      %p161 = scmp.ne.s32.totalorder %s153, %s156
      %p162 = scmp.eq.s32.totalorder %s19, 0
      %p163 = por %p161, %p162
      %p164 = scmp.ne.s32.totalorder %s153, %s156
      %p165 = scmp.eq.s32.totalorder %s24, 1
      %p166 = por %p164, %p165
      %p167 = scmp.ne.s32.totalorder %s156, %s157
      %p168 = scmp.eq.s32.totalorder %s24, 0
      %p169 = por %p167, %p168
      %p170 = scmp.ne.s32.totalorder %s156, %s157
      %p171 = scmp.eq.s32.totalorder %s25, 1
      %p172 = por %p170, %p171
      %p174 = scmp.ne.s32.totalorder %s157, %s173
      %p175 = scmp.eq.s32.totalorder %s25, 0
      %p176 = por %p174, %p175
      %s177 = ssub.s32 %s26, %s38
      %p178 = scmp.eq.s32.totalorder %s177, 0
      %s180 = sadd.s32 %s179, 1
      %s181 = scalar_select %p178, %s179, %s180
      %p184 = pneg %p178
      %p185 = scmp.eq.s32.totalorder %s19, 1
      %p186 = por %p184, %p185
      %p187 = scmp.ne.s32.totalorder %s179, %s182
      %p188 = scmp.eq.s32.totalorder %s19, 0
      %p189 = por %p187, %p188
      %p190 = scmp.ne.s32.totalorder %s179, %s182
      %p191 = scmp.eq.s32.totalorder %s24, 1
      %p192 = por %p190, %p191
      %p193 = scmp.ne.s32.totalorder %s182, %s183
      %p194 = scmp.eq.s32.totalorder %s24, 0
      %p195 = por %p193, %p194
      %p196 = scmp.ne.s32.totalorder %s182, %s183
      %p197 = scmp.eq.s32.totalorder %s25, 1
      %p198 = por %p196, %p197
      %p200 = scmp.ne.s32.totalorder %s183, %s199
      %p201 = scmp.eq.s32.totalorder %s25, 0
      %p202 = por %p200, %p201
      %p203 = scmp.le.s32.totalorder 1, %s19
      %p204 = scmp.lt.s32.totalorder %s19, 3
      %p205 = pnand %p203, %p204
      %p206 = pneg %p205
      // Predicated region
      $region9: #{tpu_custom_call.1} parent=5 // pred_check
        _
      $region10: #{tpu_custom_call.1} parent=5 // pred_check_branch
        %208 = sbr.rel (%p205) target = $region12
      $region11: #{tpu_custom_call.1} parent=5 // pred_region
        %s209 = ssub.s32 %s19, 1
        // Predicated region
        $region13: #{tpu_custom_call.1} parent=11 // pred_check
          %p210 = pneg %p80
        $region14: #{tpu_custom_call.1} parent=11 // pred_check_branch
          %212 = sbr.rel (%p210) target = $region16
        $region15: #{tpu_custom_call.1} parent=11 // pred_region
          _
        $region16: #{tpu_custom_call.1} parent=11 // pred_fallthru
          _
        // Predicated region
        $region17: #{tpu_custom_call.1} parent=11 // pred_check
          %p213 = pneg %p101
        $region18: #{tpu_custom_call.1} parent=11 // pred_check_branch
          %215 = sbr.rel (%p213) target = $region20
        $region19: #{tpu_custom_call.1} parent=11 // pred_region
          _
        $region20: #{tpu_custom_call.1} parent=11 // pred_fallthru
          _
        // Predicated region
        $region21: #{tpu_custom_call.1} parent=11 // pred_check
          %p216 = pneg %p122
        $region22: #{tpu_custom_call.1} parent=11 // pred_check_branch
          %218 = sbr.rel (%p216) target = $region24
        $region23: #{tpu_custom_call.1} parent=11 // pred_region
          _
        $region24: #{tpu_custom_call.1} parent=11 // pred_fallthru
          _
        // Predicated region
        $region25: #{tpu_custom_call.1} parent=11 // pred_check
          %p219 = pneg %p143
        $region26: #{tpu_custom_call.1} parent=11 // pred_check_branch
          %221 = sbr.rel (%p219) target = $region28
        $region27: #{tpu_custom_call.1} parent=11 // pred_region
          _
        $region28: #{tpu_custom_call.1} parent=11 // pred_fallthru
          _
      $region12: #{tpu_custom_call.1} parent=5 // pred_fallthru
        _
      %p222 = scmp.lt.s32.totalorder %s19, 2
      // Predicated region
      $region29: #{tpu_custom_call.1} parent=5 // pred_check
        %p223 = pneg %p222
      $region30: #{tpu_custom_call.1} parent=5 // pred_check_branch
        %225 = sbr.rel (%p223) target = $region32
      $region31: #{tpu_custom_call.1} parent=5 // pred_region
        // Predicated region
        $region33: #{tpu_custom_call.1} parent=31 // pred_check
          %p226 = pneg %p53
        $region34: #{tpu_custom_call.1} parent=31 // pred_check_branch
          %228 = sbr.rel (%p226) target = $region36
        $region35: #{tpu_custom_call.1} parent=31 // pred_region
          %s229 = smul.u32 32, %s27
          %p230 = scmp.lt.s32.totalorder %s26, 1
          %s231 = scalar_select %p230, %s26, 1
          %p232 = scmp.lt.s32.totalorder %s229, 31
          %s233 = scalar_select %p232, %s229, 31
          %s234 = smul.addr %s231, 32
          %s235 = sadd.s32 %s233, %s234
          %s236 = smul.addr %s235, 8
          %s237 = scalar_lea.vmem %s0, %s236
          %s238 = smul.u32 32, %s27
        $region36: #{tpu_custom_call.1} parent=31 // pred_fallthru
          _
      $region32: #{tpu_custom_call.1} parent=5 // pred_fallthru
        _
      %p239 = scmp.le.s32.totalorder 1, %s19
      %p240 = scmp.lt.s32.totalorder %s19, 3
      %p241 = pnand %p239, %p240
      %p242 = pneg %p241
      // Predicated region
      $region37: #{tpu_custom_call.1} parent=5 // pred_check
        _
      $region38: #{tpu_custom_call.1} parent=5 // pred_check_branch
        %244 = sbr.rel (%p241) target = $region40
      $region39: #{tpu_custom_call.1} parent=5 // pred_region
        %s245 = ssub.s32 %s19, 1
        %s246 = smul.u32 32, %s29
        %p247 = scmp.lt.s32.totalorder %s28, 1
        %s248 = scalar_select %p247, %s28, 1
        %p249 = scmp.lt.s32.totalorder %s246, 31
        %s250 = scalar_select %p249, %s246, 31
        %s251 = smul.addr %s248, 32
        %s252 = sadd.s32 %s250, %s251
        %s253 = smul.addr %s252, 8
        %s254 = scalar_lea.vmem %s0, %s253
        %p255 = pneg %p59
        %p256 = pneg %p56
        %p257 = pneg %p80
        %p258 = pneg %p77
        %p259 = pneg %p101
        %p260 = pneg %p98
        %p261 = pneg %p122
        %p262 = pneg %p119
        %p263 = pneg %p143
        %p264 = pneg %p140
        %p265 = pneg %p169
        %p266 = pneg %p166
        %s267 = sand.u32 %s156, 1
        %s268 = scalar_lea.sflag [#allocation5], %s267
        %s269 = sand.u32 %s156, 1
        %s270 = scalar_lea.vmem [#allocation4], %s269
        %p271 = pneg %p195
        %p272 = pneg %p192
        %s273 = sand.u32 %s182, 1
        %s274 = scalar_lea.sflag [#allocation7], %s273
        %s275 = sand.u32 %s182, 1
        %s276 = scalar_lea.vmem [#allocation6], %s275
        %s277 = smul.u32 32, %s29
        %p278 = scmp.lt.s32.totalorder %s28, 1
        %s279 = scalar_select %p278, %s28, 1
        %p280 = scmp.lt.s32.totalorder %s277, 31
        %s281 = scalar_select %p280, %s277, 31
        %s282 = smul.addr %s279, 32
        %s283 = sadd.s32 %s281, %s282
        %s284 = smul.addr %s283, 8
        %s285 = scalar_lea.vmem %s0, %s284
        %s286 = smul.u32 32, %s29
        %p287 = scmp.eq.s32.totalorder %s29, 0
        // Predicated region
        $region41: #{tpu_custom_call.1} parent=39 // pred_check
          %p288 = pneg %p287
        $region42: #{tpu_custom_call.1} parent=39 // pred_check_branch
          %290 = sbr.rel (%p288) target = $region44
        $region43: #{tpu_custom_call.1} parent=39 // pred_region
          %vm291 = vcmask 516096
          %292 = vst.msk [vmem:[#allocation2] sm:$0x1] %vm291, 0.0
          %293 = vst.msk [vmem:[#allocation3] sm:$0x1] %vm291, 0.0
        $region44: #{tpu_custom_call.1} parent=39 // pred_fallthru
          _
        %v294 = vld [vmem:[%s285] sm:$0xff]
        %v295 = vld [vmem:[%s285 + $0x8] sm:$0xff]
        %v296 = vld [vmem:[%s285 + $0x10] sm:$0xff]
        %v297 = vld [vmem:[%s285 + $0x18] sm:$0xff]
        %v298 = vld [vmem:[%s285 + $0x20] sm:$0xff]
        %v299 = vld [vmem:[%s285 + $0x28] sm:$0xff]
        %v300 = vld [vmem:[%s285 + $0x30] sm:$0xff]
        %v301 = vld [vmem:[%s285 + $0x38] sm:$0xff]
        %v302 = vld [vmem:[%s285 + $0x40] sm:$0xff]
        %v303 = vld [vmem:[%s285 + $0x48] sm:$0xff]
        %v304 = vld [vmem:[%s285 + $0x50] sm:$0xff]
        %v305 = vld [vmem:[%s285 + $0x58] sm:$0xff]
        %v306 = vld [vmem:[%s285 + $0x60] sm:$0xff]
        %v307 = vld [vmem:[%s285 + $0x68] sm:$0xff]
        %v308 = vld [vmem:[%s285 + $0x70] sm:$0xff]
        %v309 = vld [vmem:[%s285 + $0x78] sm:$0xff]
        %v310 = vld [vmem:[%s285 + $0x80] sm:$0xff]
        %v311 = vld [vmem:[%s285 + $0x88] sm:$0xff]
        %v312 = vld [vmem:[%s285 + $0x90] sm:$0xff]
        %v313 = vld [vmem:[%s285 + $0x98] sm:$0xff]
        %v314 = vld [vmem:[%s285 + $0xa0] sm:$0xff]
        %v315 = vld [vmem:[%s285 + $0xa8] sm:$0xff]
        %v316 = vld [vmem:[%s285 + $0xb0] sm:$0xff]
        %v317 = vld [vmem:[%s285 + $0xb8] sm:$0xff]
        %v318 = vld [vmem:[%s285 + $0xc0] sm:$0xff]
        %v319 = vld [vmem:[%s285 + $0xc8] sm:$0xff]
        %v320 = vld [vmem:[%s285 + $0xd0] sm:$0xff]
        %v321 = vld [vmem:[%s285 + $0xd8] sm:$0xff]
        %v322 = vld [vmem:[%s285 + $0xe0] sm:$0xff]
        %v323 = vld [vmem:[%s285 + $0xe8] sm:$0xff]
        %v324 = vld [vmem:[%s285 + $0xf0] sm:$0xff]
        %v325 = vld [vmem:[%s285 + $0xf8] sm:$0xff]
        %v326 = vld [vmem:[#allocation2] sm:$0x1]
        %vm327 = vcmask 523264
        %v328 = vsel %vm327, %v294, 0.0
        %v329 = vsel %vm327, %v295, 0.0
        %v330 = vadd.f32 %v328, %v329
        %v331 = vsel %vm327, %v296, 0.0
        %v332 = vadd.f32 %v330, %v331
        %v333 = vsel %vm327, %v297, 0.0
        %v334 = vadd.f32 %v332, %v333
        %v335 = vsel %vm327, %v298, 0.0
        %v336 = vadd.f32 %v334, %v335
        %v337 = vsel %vm327, %v299, 0.0
        %v338 = vadd.f32 %v336, %v337
        %v339 = vsel %vm327, %v300, 0.0
        %v340 = vadd.f32 %v338, %v339
        %v341 = vsel %vm327, %v301, 0.0
        %v342 = vadd.f32 %v340, %v341
        %v343 = vsel %vm327, %v302, 0.0
        %v344 = vadd.f32 %v342, %v343
        %v345 = vsel %vm327, %v303, 0.0
        %v346 = vadd.f32 %v344, %v345
        %v347 = vsel %vm327, %v304, 0.0
        %v348 = vadd.f32 %v346, %v347
        %v349 = vsel %vm327, %v305, 0.0
        %v350 = vadd.f32 %v348, %v349
        %v351 = vsel %vm327, %v306, 0.0
        %v352 = vadd.f32 %v350, %v351
        %v353 = vsel %vm327, %v307, 0.0
        %v354 = vadd.f32 %v352, %v353
        %v355 = vsel %vm327, %v308, 0.0
        %v356 = vadd.f32 %v354, %v355
        %v357 = vsel %vm327, %v309, 0.0
        %v358 = vadd.f32 %v356, %v357
        %v359 = vsel %vm327, %v310, 0.0
        %v360 = vadd.f32 %v358, %v359
        %v361 = vsel %vm327, %v311, 0.0
        %v362 = vadd.f32 %v360, %v361
        %v363 = vsel %vm327, %v312, 0.0
        %v364 = vadd.f32 %v362, %v363
        %v365 = vsel %vm327, %v313, 0.0
        %v366 = vadd.f32 %v364, %v365
        %v367 = vsel %vm327, %v314, 0.0
        %v368 = vadd.f32 %v366, %v367
        %v369 = vsel %vm327, %v315, 0.0
        %v370 = vadd.f32 %v368, %v369
        %v371 = vsel %vm327, %v316, 0.0
        %v372 = vadd.f32 %v370, %v371
        %v373 = vsel %vm327, %v317, 0.0
        %v374 = vadd.f32 %v372, %v373
        %v375 = vsel %vm327, %v318, 0.0
        %v376 = vadd.f32 %v374, %v375
        %v377 = vsel %vm327, %v319, 0.0
        %v378 = vadd.f32 %v376, %v377
        %v379 = vsel %vm327, %v320, 0.0
        %v380 = vadd.f32 %v378, %v379
        %v381 = vsel %vm327, %v321, 0.0
        %v382 = vadd.f32 %v380, %v381
        %v383 = vsel %vm327, %v322, 0.0
        %v384 = vadd.f32 %v382, %v383
        %v385 = vsel %vm327, %v323, 0.0
        %v386 = vadd.f32 %v384, %v385
        %v387 = vsel %vm327, %v324, 0.0
        %v388 = vadd.f32 %v386, %v387
        %v389 = vsel %vm327, %v325, 0.0
        %v390 = vadd.f32 %v388, %v389
        %v391 = vrot.slane %v390, 4
        %v392 = vadd.f32 %v390, %v391
        %v393 = vrot.slane %v392, 2
        %v394 = vadd.f32 %v392, %v393
        %v395 = vrot.slane %v394, 1
        %v396 = vadd.f32 %v394, %v395
        %v397 = vadd.f32 %v326, %v396
        %vm398 = vcmask 516096
        %399 = vst.msk [vmem:[#allocation2] sm:$0x1] %vm398, %v397
        %v400 = vld [vmem:[#allocation3] sm:$0x1]
        %v401 = vmul.f32 %v294, %v294
        %v402 = vmul.f32 %v295, %v295
        %v403 = vmul.f32 %v296, %v296
        %v404 = vmul.f32 %v297, %v297
        %v405 = vmul.f32 %v298, %v298
        %v406 = vmul.f32 %v299, %v299
        %v407 = vmul.f32 %v300, %v300
        %v408 = vmul.f32 %v301, %v301
        %v409 = vmul.f32 %v302, %v302
        %v410 = vmul.f32 %v303, %v303
        %v411 = vmul.f32 %v304, %v304
        %v412 = vmul.f32 %v305, %v305
        %v413 = vmul.f32 %v306, %v306
        %v414 = vmul.f32 %v307, %v307
        %v415 = vmul.f32 %v308, %v308
        %v416 = vmul.f32 %v309, %v309
        %v417 = vmul.f32 %v310, %v310
        %v418 = vmul.f32 %v311, %v311
        %v419 = vmul.f32 %v312, %v312
        %v420 = vmul.f32 %v313, %v313
        %v421 = vmul.f32 %v314, %v314
        %v422 = vmul.f32 %v315, %v315
        %v423 = vmul.f32 %v316, %v316
        %v424 = vmul.f32 %v317, %v317
        %v425 = vmul.f32 %v318, %v318
        %v426 = vmul.f32 %v319, %v319
        %v427 = vmul.f32 %v320, %v320
        %v428 = vmul.f32 %v321, %v321
        %v429 = vmul.f32 %v322, %v322
        %v430 = vmul.f32 %v323, %v323
        %v431 = vmul.f32 %v324, %v324
        %v432 = vmul.f32 %v325, %v325
        %v433 = vsel %vm327, %v401, 0.0
        %v434 = vsel %vm327, %v402, 0.0
        %v435 = vadd.f32 %v433, %v434
        %v436 = vsel %vm327, %v403, 0.0
        %v437 = vadd.f32 %v435, %v436
        %v438 = vsel %vm327, %v404, 0.0
        %v439 = vadd.f32 %v437, %v438
        %v440 = vsel %vm327, %v405, 0.0
        %v441 = vadd.f32 %v439, %v440
        %v442 = vsel %vm327, %v406, 0.0
        %v443 = vadd.f32 %v441, %v442
        %v444 = vsel %vm327, %v407, 0.0
        %v445 = vadd.f32 %v443, %v444
        %v446 = vsel %vm327, %v408, 0.0
        %v447 = vadd.f32 %v445, %v446
        %v448 = vsel %vm327, %v409, 0.0
        %v449 = vadd.f32 %v447, %v448
        %v450 = vsel %vm327, %v410, 0.0
        %v451 = vadd.f32 %v449, %v450
        %v452 = vsel %vm327, %v411, 0.0
        %v453 = vadd.f32 %v451, %v452
        %v454 = vsel %vm327, %v412, 0.0
        %v455 = vadd.f32 %v453, %v454
        %v456 = vsel %vm327, %v413, 0.0
        %v457 = vadd.f32 %v455, %v456
        %v458 = vsel %vm327, %v414, 0.0
        %v459 = vadd.f32 %v457, %v458
        %v460 = vsel %vm327, %v415, 0.0
        %v461 = vadd.f32 %v459, %v460
        %v462 = vsel %vm327, %v416, 0.0
        %v463 = vadd.f32 %v461, %v462
        %v464 = vsel %vm327, %v417, 0.0
        %v465 = vadd.f32 %v463, %v464
        %v466 = vsel %vm327, %v418, 0.0
        %v467 = vadd.f32 %v465, %v466
        %v468 = vsel %vm327, %v419, 0.0
        %v469 = vadd.f32 %v467, %v468
        %v470 = vsel %vm327, %v420, 0.0
        %v471 = vadd.f32 %v469, %v470
        %v472 = vsel %vm327, %v421, 0.0
        %v473 = vadd.f32 %v471, %v472
        %v474 = vsel %vm327, %v422, 0.0
        %v475 = vadd.f32 %v473, %v474
        %v476 = vsel %vm327, %v423, 0.0
        %v477 = vadd.f32 %v475, %v476
        %v478 = vsel %vm327, %v424, 0.0
        %v479 = vadd.f32 %v477, %v478
        %v480 = vsel %vm327, %v425, 0.0
        %v481 = vadd.f32 %v479, %v480
        %v482 = vsel %vm327, %v426, 0.0
        %v483 = vadd.f32 %v481, %v482
        %v484 = vsel %vm327, %v427, 0.0
        %v485 = vadd.f32 %v483, %v484
        %v486 = vsel %vm327, %v428, 0.0
        %v487 = vadd.f32 %v485, %v486
        %v488 = vsel %vm327, %v429, 0.0
        %v489 = vadd.f32 %v487, %v488
        %v490 = vsel %vm327, %v430, 0.0
        %v491 = vadd.f32 %v489, %v490
        %v492 = vsel %vm327, %v431, 0.0
        %v493 = vadd.f32 %v491, %v492
        %v494 = vsel %vm327, %v432, 0.0
        %v495 = vadd.f32 %v493, %v494
        %v496 = vrot.slane %v495, 4
        %v497 = vadd.f32 %v495, %v496
        %v498 = vrot.slane %v497, 2
        %v499 = vadd.f32 %v497, %v498
        %v500 = vrot.slane %v499, 1
        %v501 = vadd.f32 %v499, %v500
        %v502 = vadd.f32 %v400, %v501
        %503 = vst.msk [vmem:[#allocation3] sm:$0x1] %vm398, %v502
        // Predicated region
        $region45: #{tpu_custom_call.1} parent=39 // pred_check
          %p504 = pneg %p287
        $region46: #{tpu_custom_call.1} parent=39 // pred_check_branch
          %506 = sbr.rel (%p504) target = $region48
        $region47: #{tpu_custom_call.1} parent=39 // pred_region
          %v507 = vld [vmem:[%s1] sm:$0xff]
          %v508 = vld [vmem:[%s1 + $0x8] sm:$0xff]
          %v509 = vld [vmem:[%s1 + $0x10] sm:$0xff]
          %v510 = vld [vmem:[%s1 + $0x18] sm:$0xff]
          %v511 = vld [vmem:[%s1 + $0x20] sm:$0xff]
          %v512 = vld [vmem:[%s1 + $0x28] sm:$0xff]
          %v513 = vld [vmem:[%s1 + $0x30] sm:$0xff]
          %v514 = vld [vmem:[%s1 + $0x38] sm:$0xff]
          %v515 = vld [vmem:[%s2] sm:$0xff]
          %v516 = vld [vmem:[%s2 + $0x8] sm:$0xff]
          %v517 = vld [vmem:[%s2 + $0x10] sm:$0xff]
          %v518 = vld [vmem:[%s2 + $0x18] sm:$0xff]
          %v519 = vld [vmem:[#allocation2] sm:$0x1]
          %v521 = vsel %vm327, %v519, 0
          %523 = vmatprep.subr.mxu0 0.0
          %524 = vmatpush1.msra.mxu0 0.0
          %525 = vmatprep.subr.mxu0 0.0
          %526 = vmatpush1.msra.mxu0 0.0
          %527 = vmatprep.subr.mxu0 0.0
          %528 = vmatpush1.msra.mxu0 0.0
          %529 = vmatprep.subr.mxu0 0.0
          %530 = vmatpush1.msra.mxu0 0.0
          %531 = vmatprep.subr.mxu0 0.0
          %532 = vmatpush1.msra.mxu0 0.0
          %533 = vmatprep.subr.mxu0 0.0
          %534 = vmatpush1.msra.mxu0 0.0
          %535 = vmatprep.subr.mxu0 0.0
          %536 = vmatpush1.msra.mxu0 0.0
          %537 = vmatprep.subr.mxu0 0.0
          %538 = vmatpush1.msra.mxu0 0.0
          %539 = vmatprep.subr.mxu0 0.0
          %540 = vmatpush1.msra.mxu0 %v514
          %541 = vmatprep.subr.mxu0 0.0
          %542 = vmatpush1.msra.mxu0 %v513
          %543 = vmatprep.subr.mxu0 0.0
          %544 = vmatpush1.msra.mxu0 %v512
          %545 = vmatprep.subr.mxu0 0.0
          %546 = vmatpush1.msra.mxu0 %v511
          %547 = vmatprep.subr.mxu0 0.0
          %548 = vmatpush1.msra.mxu0 %v510
          %549 = vmatprep.subr.mxu0 0.0
          %550 = vmatpush1.msra.mxu0 %v509
          %551 = vmatprep.subr.mxu0 0.0
          %552 = vmatpush1.msra.mxu0 %v508
          %553 = vmatprep.subr.mxu0 0.0
          %554 = vmatpush1.msra.mxu0 %v507
          %555 = vmatprep.subr.mxu0 0.0
          %556 = vmatpush2.msra.mxu0 0.0
          %557 = vmatprep.subr.mxu0 0.0
          %558 = vmatpush2.msra.mxu0 0.0
          %559 = vmatprep.subr.mxu0 0.0
          %560 = vmatpush2.msra.mxu0 0.0
          %561 = vmatprep.subr.mxu0 0.0
          %562 = vmatpush2.msra.mxu0 0.0
          %563 = vmatprep.subr.mxu0 0.0
          %564 = vmatpush2.msra.mxu0 0.0
          %565 = vmatprep.subr.mxu0 0.0
          %566 = vmatpush2.msra.mxu0 0.0
          %567 = vmatprep.subr.mxu0 0.0
          %568 = vmatpush2.msra.mxu0 0.0
          %569 = vmatprep.subr.mxu0 0.0
          %570 = vmatpush2.msra.mxu0 0.0
          %571 = vmatprep.subr.mxu0 0.0
          %572 = vmatpush2.msra.mxu0 0.0
          %573 = vmatprep.subr.mxu0 0.0
          %574 = vmatpush2.msra.mxu0 0.0
          %575 = vmatprep.subr.mxu0 0.0
          %576 = vmatpush2.msra.mxu0 0.0
          %577 = vmatprep.subr.mxu0 0.0
          %578 = vmatpush2.msra.mxu0 0.0
          %579 = vmatprep.subr.mxu0 0.0
          %580 = vmatpush2.msra.mxu0 0.0
          %581 = vmatprep.subr.mxu0 0.0
          %582 = vmatpush2.msra.mxu0 0.0
          %583 = vmatprep.subr.mxu0 0.0
          %584 = vmatpush2.msra.mxu0 0.0
          %585 = vmatprep.subr.mxu0 0.0
          %586 = vmatpush2.msra.mxu0 0.0
          %587 = vmatprep.mubr.f32.mxu0 0.0
          %588 = vmatmul.mubr.f32.gmra.mxu0 %v521
          %v589 = vpop.f32.mrf.mxu0
          %v590 = vadd.f32 0.0, %v589
          %v591 = vpop.f32.mrf.mxu0
          %592 = vdwg.mxu0
          %v593 = vld [vmem:[#allocation3] sm:$0x1]
          %v595 = vsel %vm327, %v593, 0
          %597 = vmatprep.subr.mxu0 0.0
          %598 = vmatpush1.msra.mxu0 0.0
          %599 = vmatprep.subr.mxu0 0.0
          %600 = vmatpush1.msra.mxu0 0.0
          %601 = vmatprep.subr.mxu0 0.0
          %602 = vmatpush1.msra.mxu0 0.0
          %603 = vmatprep.subr.mxu0 0.0
          %604 = vmatpush1.msra.mxu0 0.0
          %605 = vmatprep.subr.mxu0 0.0
          %606 = vmatpush1.msra.mxu0 0.0
          %607 = vmatprep.subr.mxu0 0.0
          %608 = vmatpush1.msra.mxu0 0.0
          %609 = vmatprep.subr.mxu0 0.0
          %610 = vmatpush1.msra.mxu0 0.0
          %611 = vmatprep.subr.mxu0 0.0
          %612 = vmatpush1.msra.mxu0 0.0
          %613 = vmatprep.subr.mxu0 0.0
          %614 = vmatpush1.msra.mxu0 %v514
          %615 = vmatprep.subr.mxu0 0.0
          %616 = vmatpush1.msra.mxu0 %v513
          %617 = vmatprep.subr.mxu0 0.0
          %618 = vmatpush1.msra.mxu0 %v512
          %619 = vmatprep.subr.mxu0 0.0
          %620 = vmatpush1.msra.mxu0 %v511
          %621 = vmatprep.subr.mxu0 0.0
          %622 = vmatpush1.msra.mxu0 %v510
          %623 = vmatprep.subr.mxu0 0.0
          %624 = vmatpush1.msra.mxu0 %v509
          %625 = vmatprep.subr.mxu0 0.0
          %626 = vmatpush1.msra.mxu0 %v508
          %627 = vmatprep.subr.mxu0 0.0
          %628 = vmatpush1.msra.mxu0 %v507
          %629 = vmatprep.subr.mxu0 0.0
          %630 = vmatpush2.msra.mxu0 0.0
          %631 = vmatprep.subr.mxu0 0.0
          %632 = vmatpush2.msra.mxu0 0.0
          %633 = vmatprep.subr.mxu0 0.0
          %634 = vmatpush2.msra.mxu0 0.0
          %635 = vmatprep.subr.mxu0 0.0
          %636 = vmatpush2.msra.mxu0 0.0
          %637 = vmatprep.subr.mxu0 0.0
          %638 = vmatpush2.msra.mxu0 0.0
          %639 = vmatprep.subr.mxu0 0.0
          %640 = vmatpush2.msra.mxu0 0.0
          %641 = vmatprep.subr.mxu0 0.0
          %642 = vmatpush2.msra.mxu0 0.0
          %643 = vmatprep.subr.mxu0 0.0
          %644 = vmatpush2.msra.mxu0 0.0
          %645 = vmatprep.subr.mxu0 0.0
          %646 = vmatpush2.msra.mxu0 0.0
          %647 = vmatprep.subr.mxu0 0.0
          %648 = vmatpush2.msra.mxu0 0.0
          %649 = vmatprep.subr.mxu0 0.0
          %650 = vmatpush2.msra.mxu0 0.0
          %651 = vmatprep.subr.mxu0 0.0
          %652 = vmatpush2.msra.mxu0 0.0
          %653 = vmatprep.subr.mxu0 0.0
          %654 = vmatpush2.msra.mxu0 0.0
          %655 = vmatprep.subr.mxu0 0.0
          %656 = vmatpush2.msra.mxu0 0.0
          %657 = vmatprep.subr.mxu0 0.0
          %658 = vmatpush2.msra.mxu0 0.0
          %659 = vmatprep.subr.mxu0 0.0
          %660 = vmatpush2.msra.mxu0 0.0
          %661 = vmatprep.mubr.f32.mxu0 0.0
          %662 = vmatmul.mubr.f32.gmra.mxu0 %v595
          %v663 = vpop.f32.mrf.mxu0
          %v664 = vadd.f32 0.0, %v663
          %v665 = vpop.f32.mrf.mxu0
          %666 = vdwg.mxu0
          %v667 = vmul.f32 %v590, 0.001953125
          %v668 = vmul.f32 %v664, 0.001953125
          %v669 = vmul.f32 %v667, %v667
          %v670 = vsub.f32 %v668, %v669
          %v671 = vmax.f32 %v670, 0.0
          %v672 = vadd.f32 %v671, 1e-05
          %v673 = vrsqrt.pop %v672
          %vm674 = vcmask 261120
          %v676 = vsel %vm674, %v667, 0
          %678 = vmatprep.subr.mxu0 0.0
          %679 = vmatpush1.msra.mxu0 0.0
          %680 = vmatprep.subr.mxu0 0.0
          %681 = vmatpush1.msra.mxu0 0.0
          %682 = vmatprep.subr.mxu0 0.0
          %683 = vmatpush1.msra.mxu0 0.0
          %684 = vmatprep.subr.mxu0 0.0
          %685 = vmatpush1.msra.mxu0 0.0
          %686 = vmatprep.subr.mxu0 0.0
          %687 = vmatpush1.msra.mxu0 0.0
          %688 = vmatprep.subr.mxu0 0.0
          %689 = vmatpush1.msra.mxu0 0.0
          %690 = vmatprep.subr.mxu0 0.0
          %691 = vmatpush1.msra.mxu0 0.0
          %692 = vmatprep.subr.mxu0 0.0
          %693 = vmatpush1.msra.mxu0 0.0
          %694 = vmatprep.subr.mxu0 0.0
          %695 = vmatpush1.msra.mxu0 0.0
          %696 = vmatprep.subr.mxu0 0.0
          %697 = vmatpush1.msra.mxu0 0.0
          %698 = vmatprep.subr.mxu0 0.0
          %699 = vmatpush1.msra.mxu0 0.0
          %700 = vmatprep.subr.mxu0 0.0
          %701 = vmatpush1.msra.mxu0 0.0
          %702 = vmatprep.subr.mxu0 0.0
          %703 = vmatpush1.msra.mxu0 %v518
          %704 = vmatprep.subr.mxu0 0.0
          %705 = vmatpush1.msra.mxu0 %v517
          %706 = vmatprep.subr.mxu0 0.0
          %707 = vmatpush1.msra.mxu0 %v516
          %708 = vmatprep.subr.mxu0 0.0
          %709 = vmatpush1.msra.mxu0 %v515
          %710 = vmatprep.subr.mxu0 0.0
          %711 = vmatpush2.msra.mxu0 0.0
          %712 = vmatprep.subr.mxu0 0.0
          %713 = vmatpush2.msra.mxu0 0.0
          %714 = vmatprep.subr.mxu0 0.0
          %715 = vmatpush2.msra.mxu0 0.0
          %716 = vmatprep.subr.mxu0 0.0
          %717 = vmatpush2.msra.mxu0 0.0
          %718 = vmatprep.subr.mxu0 0.0
          %719 = vmatpush2.msra.mxu0 0.0
          %720 = vmatprep.subr.mxu0 0.0
          %721 = vmatpush2.msra.mxu0 0.0
          %722 = vmatprep.subr.mxu0 0.0
          %723 = vmatpush2.msra.mxu0 0.0
          %724 = vmatprep.subr.mxu0 0.0
          %725 = vmatpush2.msra.mxu0 0.0
          %726 = vmatprep.subr.mxu0 0.0
          %727 = vmatpush2.msra.mxu0 0.0
          %728 = vmatprep.subr.mxu0 0.0
          %729 = vmatpush2.msra.mxu0 0.0
          %730 = vmatprep.subr.mxu0 0.0
          %731 = vmatpush2.msra.mxu0 0.0
          %732 = vmatprep.subr.mxu0 0.0
          %733 = vmatpush2.msra.mxu0 0.0
          %734 = vmatprep.subr.mxu0 0.0
          %735 = vmatpush2.msra.mxu0 0.0
          %736 = vmatprep.subr.mxu0 0.0
          %737 = vmatpush2.msra.mxu0 0.0
          %738 = vmatprep.subr.mxu0 0.0
          %739 = vmatpush2.msra.mxu0 0.0
          %740 = vmatprep.subr.mxu0 0.0
          %741 = vmatpush2.msra.mxu0 0.0
          %742 = vmatprep.mubr.f32.mxu0 0.0
          %743 = vmatmul.mubr.f32.gmra.mxu0 %v676
          %v744 = vpop.f32.mrf.mxu0
          %v745 = vadd.f32 0.0, %v744
          %v746 = vpop.f32.mrf.mxu0
          %747 = vdwg.mxu0
          %v749 = vsel %vm674, %v673, 0
          %751 = vmatprep.subr.mxu0 0.0
          %752 = vmatpush1.msra.mxu0 0.0
          %753 = vmatprep.subr.mxu0 0.0
          %754 = vmatpush1.msra.mxu0 0.0
          %755 = vmatprep.subr.mxu0 0.0
          %756 = vmatpush1.msra.mxu0 0.0
          %757 = vmatprep.subr.mxu0 0.0
          %758 = vmatpush1.msra.mxu0 0.0
          %759 = vmatprep.subr.mxu0 0.0
          %760 = vmatpush1.msra.mxu0 0.0
          %761 = vmatprep.subr.mxu0 0.0
          %762 = vmatpush1.msra.mxu0 0.0
          %763 = vmatprep.subr.mxu0 0.0
          %764 = vmatpush1.msra.mxu0 0.0
          %765 = vmatprep.subr.mxu0 0.0
          %766 = vmatpush1.msra.mxu0 0.0
          %767 = vmatprep.subr.mxu0 0.0
          %768 = vmatpush1.msra.mxu0 0.0
          %769 = vmatprep.subr.mxu0 0.0
          %770 = vmatpush1.msra.mxu0 0.0
          %771 = vmatprep.subr.mxu0 0.0
          %772 = vmatpush1.msra.mxu0 0.0
          %773 = vmatprep.subr.mxu0 0.0
          %774 = vmatpush1.msra.mxu0 0.0
          %775 = vmatprep.subr.mxu0 0.0
          %776 = vmatpush1.msra.mxu0 %v518
          %777 = vmatprep.subr.mxu0 0.0
          %778 = vmatpush1.msra.mxu0 %v517
          %779 = vmatprep.subr.mxu0 0.0
          %780 = vmatpush1.msra.mxu0 %v516
          %781 = vmatprep.subr.mxu0 0.0
          %782 = vmatpush1.msra.mxu0 %v515
          %783 = vmatprep.subr.mxu0 0.0
          %784 = vmatpush2.msra.mxu0 0.0
          %785 = vmatprep.subr.mxu0 0.0
          %786 = vmatpush2.msra.mxu0 0.0
          %787 = vmatprep.subr.mxu0 0.0
          %788 = vmatpush2.msra.mxu0 0.0
          %789 = vmatprep.subr.mxu0 0.0
          %790 = vmatpush2.msra.mxu0 0.0
          %791 = vmatprep.subr.mxu0 0.0
          %792 = vmatpush2.msra.mxu0 0.0
          %793 = vmatprep.subr.mxu0 0.0
          %794 = vmatpush2.msra.mxu0 0.0
          %795 = vmatprep.subr.mxu0 0.0
          %796 = vmatpush2.msra.mxu0 0.0
          %797 = vmatprep.subr.mxu0 0.0
          %798 = vmatpush2.msra.mxu0 0.0
          %799 = vmatprep.subr.mxu0 0.0
          %800 = vmatpush2.msra.mxu0 0.0
          %801 = vmatprep.subr.mxu0 0.0
          %802 = vmatpush2.msra.mxu0 0.0
          %803 = vmatprep.subr.mxu0 0.0
          %804 = vmatpush2.msra.mxu0 0.0
          %805 = vmatprep.subr.mxu0 0.0
          %806 = vmatpush2.msra.mxu0 0.0
          %807 = vmatprep.subr.mxu0 0.0
          %808 = vmatpush2.msra.mxu0 0.0
          %809 = vmatprep.subr.mxu0 0.0
          %810 = vmatpush2.msra.mxu0 0.0
          %811 = vmatprep.subr.mxu0 0.0
          %812 = vmatpush2.msra.mxu0 0.0
          %813 = vmatprep.subr.mxu0 0.0
          %814 = vmatpush2.msra.mxu0 0.0
          %815 = vmatprep.mubr.f32.mxu0 0.0
          %816 = vmatmul.mubr.f32.gmra.mxu0 %v749
          %v817 = vpop.f32.mrf.mxu0
          %v818 = vadd.f32 0.0, %v817
          %v819 = vpop.f32.mrf.mxu0
          %820 = vdwg.mxu0
          %v821 = vld [vmem:[%s3] sm:$0x1]
          %v822 = vmul.f32 %v818, %v821
          %823 = vst.msk [vmem:[%s270] sm:$0x1] %vm398, %v822
          %v824 = vld [vmem:[%s4] sm:$0x1]
          %v825 = vmul.f32 %v745, %v822
          %v826 = vsub.f32 %v824, %v825
          %827 = vst.msk [vmem:[%s276] sm:$0x1] %vm398, %v826
        $region48: #{tpu_custom_call.1} parent=39 // pred_fallthru
          _
        %s828 = sand.u32 %s156, 1
        %s829 = scalar_lea.sflag [#allocation5], %s828
        %s830 = sand.u32 %s156, 1
        %s831 = scalar_lea.vmem [#allocation4], %s830
        %s832 = sand.u32 %s182, 1
        %s833 = scalar_lea.sflag [#allocation7], %s832
        %s834 = sand.u32 %s182, 1
        %s835 = scalar_lea.vmem [#allocation6], %s834
        // Predicated region
        $region49: #{tpu_custom_call.1} parent=39 // pred_check
          %p836 = pneg %p166
        $region50: #{tpu_custom_call.1} parent=39 // pred_check_branch
          %838 = sbr.rel (%p836) target = $region52
        $region51: #{tpu_custom_call.1} parent=39 // pred_region
          %s840 = ssub.s32 16, 16
          %841 = vsyncadd %s829, %s840
          %s842 = smul.addr %s28, 16
          %s843 = scalar_lea.hbm %s5, %s842
          %s845 = sshll.u32 %s831, 4
          %s846 = int_to_ptr.vmem [resolvable:$true] %s845
          %848 = dma.vmem_to_hbm [thread:$0]  %s846, 16, %s843, %s829
        $region52: #{tpu_custom_call.1} parent=39 // pred_fallthru
          _
        // Predicated region
        $region53: #{tpu_custom_call.1} parent=39 // pred_check
          %p849 = pneg %p192
        $region54: #{tpu_custom_call.1} parent=39 // pred_check_branch
          %851 = sbr.rel (%p849) target = $region56
        $region55: #{tpu_custom_call.1} parent=39 // pred_region
          %s853 = ssub.s32 16, 16
          %854 = vsyncadd %s833, %s853
          %s855 = smul.addr %s28, 16
          %s856 = scalar_lea.hbm %s6, %s855
          %s858 = sshll.u32 %s835, 4
          %s859 = int_to_ptr.vmem [resolvable:$true] %s858
          %861 = dma.vmem_to_hbm [thread:$0]  %s859, 16, %s856, %s833
        $region56: #{tpu_custom_call.1} parent=39 // pred_fallthru
          _
      $region40: #{tpu_custom_call.1} parent=5 // pred_fallthru
        _
      %p862 = scmp.le.s32.totalorder 2, %s19
      // Predicated region
      $region57: #{tpu_custom_call.1} parent=5 // pred_check
        %p863 = pneg %p862
      $region58: #{tpu_custom_call.1} parent=5 // pred_check_branch
        %865 = sbr.rel (%p863) target = $region60
      $region59: #{tpu_custom_call.1} parent=5 // pred_region
        %s866 = ssub.s32 %s19, 2
        // Predicated region
        $region61: #{tpu_custom_call.1} parent=59 // pred_check
          %p867 = pneg %p172
        $region62: #{tpu_custom_call.1} parent=59 // pred_check_branch
          %869 = sbr.rel (%p867) target = $region64
        $region63: #{tpu_custom_call.1} parent=59 // pred_region
          %s870 = sand.u32 %s157, 1
          %s871 = scalar_lea.sflag [#allocation5], %s870
          %s872 = sand.u32 %s157, 1
          %s873 = scalar_lea.vmem [#allocation4], %s872
          %874 = dma.done %s871, 16
        $region64: #{tpu_custom_call.1} parent=59 // pred_fallthru
          _
        // Predicated region
        $region65: #{tpu_custom_call.1} parent=59 // pred_check
          %p875 = pneg %p198
        $region66: #{tpu_custom_call.1} parent=59 // pred_check_branch
          %877 = sbr.rel (%p875) target = $region68
        $region67: #{tpu_custom_call.1} parent=59 // pred_region
          %s878 = sand.u32 %s183, 1
          %s879 = scalar_lea.sflag [#allocation7], %s878
          %s880 = sand.u32 %s183, 1
          %s881 = scalar_lea.vmem [#allocation6], %s880
          %882 = dma.done %s879, 16
        $region68: #{tpu_custom_call.1} parent=59 // pred_fallthru
          _
      $region60: #{tpu_custom_call.1} parent=5 // pred_fallthru
        _
    $region6: #{tpu_custom_call.1} parent=1 // loop_footer
      %s23 = sadd.s32 1, %s19
    $region7: #{tpu_custom_call.1} parent=1 // loop_footer_branch
      %18 = sbr.rel target = $region3
    $region8: #{tpu_custom_call.1} parent=1 // loop_exit
      _
    %883 = vsyncpa [#allocation5], 1
    %s884 = scalar_lea.sflag [#allocation5], 1
    %885 = vsyncpa %s884, 1
    %886 = vsyncpa [#allocation7], 1
    %s887 = scalar_lea.sflag [#allocation7], 1
    %888 = vsyncpa %s887, 1

</llo_original>
